<compile_context>
chip_gen: v6e
topology: v6e:2x2x1
jax: 0.10.0
libtpu: 0.0.40
codegen_flags: <defaults>
</compile_context>

<pallas_src>
import jax
import jax.numpy as jnp
from jax.experimental import pallas as pl
from jax.experimental.pallas import tpu as pltpu


def dqn_kernel(x_ref, w1_ref, b1_ref, w2_ref, b2_ref, o_ref):
    x = x_ref[...]                                             # [TB, S]
    w1 = w1_ref[...]                                           # [S,  H]
    b1 = b1_ref[...]                                           # [1,  H]
    w2 = w2_ref[...]                                           # [H,  A]
    b2 = b2_ref[...]                                           # [1,  A]

    # linear1: x @ W1 + b1   (MXU, f32 accumulation)
    h = jnp.dot(x, w1, preferred_element_type=jnp.float32) + b1     # [TB, H] f32

    # dropout (eval mode => identity), then ReLU (VPU, f32)
    h = jnp.maximum(h, 0.0)

    # linear2: h @ W2 + b2   (MXU, f32 accumulation)
    logits = jnp.dot(h, w2, preferred_element_type=jnp.float32) + b2  # [TB, A] f32

    # numerically stable softmax over the action dim; reciprocal on the EUP.
    m = jnp.max(logits, axis=-1, keepdims=True)
    e = jnp.exp(logits - m)
    denom = jnp.sum(e, axis=-1, keepdims=True)
    o_ref[...] = (e * pl.reciprocal(denom, approx=True)).astype(o_ref.dtype)


def _round_up(n, m):
    return ((n + m - 1) // m) * m


def dqn_forward(x, w1, b1, w2, b2, *, block_b=128, compute_dtype=None):
    """Forward pass. x: [B, S] -> probs [B, A] (f32).

    compute_dtype: optionally cast x/W1/W2 (e.g. jnp.bfloat16) at the call
    boundary to halve MXU/DMA input bytes; accumulation & activations stay f32.
    """
    B, S = x.shape
    H = w1.shape[1]
    A = w2.shape[1]

    if compute_dtype is not None:
        x = x.astype(compute_dtype)
        w1 = w1.astype(compute_dtype)
        w2 = w2.astype(compute_dtype)
        # biases stay f32: they are added after f32 accumulation.

    # Batch tile: multiple of 8 sublanes, capped at block_b (<=256 recommended).
    tb = min(block_b, _round_up(B, 8))
    b_padded = _round_up(B, tb)
    if b_padded != B:
        x = jnp.pad(x, ((0, b_padded - B), (0, 0)))

    out = pl.pallas_call(
        dqn_kernel,
        out_shape=jax.ShapeDtypeStruct((b_padded, A), jnp.float32),
        grid_spec=pl.GridSpec(
            grid=(b_padded // tb,),
            in_specs=[
                pl.BlockSpec((tb, S), lambda i: (i, 0)),   # x: tiled over batch
                pl.BlockSpec((S, H), lambda i: (0, 0)),    # W1: VMEM-resident
                pl.BlockSpec((1, H), lambda i: (0, 0)),    # b1: VMEM-resident
                pl.BlockSpec((H, A), lambda i: (0, 0)),    # W2: VMEM-resident
                pl.BlockSpec((1, A), lambda i: (0, 0)),    # b2: VMEM-resident
            ],
            out_specs=pl.BlockSpec((tb, A), lambda i: (i, 0)),
        ),
        compiler_params=pltpu.CompilerParams(
            dimension_semantics=("parallel",)),  # shards across v7x's 2 TCs
    )(x, w1, b1, w2, b2)

    return out[:B]


def init_params(key, state_space=4, hidden=128, action_space=2):
    # Deterministic init mimicking PyTorch nn.Linear default:
    # U(-1/sqrt(fan_in), 1/sqrt(fan_in)).
    k1, k2, k3, k4 = jax.random.split(key, 4)
    bound1 = 1.0 / jnp.sqrt(state_space)
    bound2 = 1.0 / jnp.sqrt(hidden)
    w1 = jax.random.uniform(k1, (state_space, hidden), jnp.float32, -bound1, bound1)
    b1 = jax.random.uniform(k2, (1, hidden), jnp.float32, -bound1, bound1)
    w2 = jax.random.uniform(k3, (hidden, action_space), jnp.float32, -bound2, bound2)
    b2 = jax.random.uniform(k4, (1, action_space), jnp.float32, -bound2, bound2)
    return w1, b1, w2, b2


def _reference(x, w1, b1, w2, b2):
    h = jnp.maximum(x @ w1 + b1, 0.0)
    return jax.nn.softmax(h @ w2 + b2, axis=-1)


if __name__ == "__main__":
    key = jax.random.PRNGKey(0)
    k_params, k_x = jax.random.split(key)

    # CartPole: state_space=4, action_space=2. Batch many env states per call
    # to amortize kernel launch overhead (here 256 -> 2 grid steps of 128).
    B, S, H, A = 256, 4, 128, 2
    w1, b1, w2, b2 = init_params(k_params, S, H, A)
    x = jax.random.normal(k_x, (B, S), jnp.float32)

    # f32 path (tolerance loosened slightly for the approx EUP reciprocal).
    out = jax.block_until_ready(dqn_forward(x, w1, b1, w2, b2))
    ref = _reference(x, w1, b1, w2, b2)
    assert out.shape == (B, A)
    assert jnp.allclose(out, ref, atol=1e-2, rtol=0.0)
    assert jnp.allclose(jnp.sum(out, axis=-1), 1.0, atol=2e-2)

    # Non-multiple-of-tile batch exercises the padding path.
    x_small = x[:37]
    out_small = jax.block_until_ready(dqn_forward(x_small, w1, b1, w2, b2))
    assert out_small.shape == (37, A)
    assert jnp.allclose(out_small, ref[:37], atol=1e-2, rtol=0.0)

    # bf16 MXU-input path (v6e/v7x friendly; f32 accumulation keeps accuracy).
    out_bf16 = jax.block_until_ready(
        dqn_forward(x, w1, b1, w2, b2, compute_dtype=jnp.bfloat16))
    assert out_bf16.shape == (B, A)
    assert jnp.allclose(out_bf16, ref, atol=5e-2, rtol=0.0)

    print("KERNEL_OK")
</pallas_src>

<mosaic_0001>
module attributes {stable_mosaic.version = 11 : i64} {
  func.func @dqn_kernel(%arg0: i32, %arg1: memref<128x4xf32, #tpu.memory_space<vmem>>, %arg2: memref<4x128xf32, #tpu.memory_space<vmem>>, %arg3: memref<1x128xf32, #tpu.memory_space<vmem>>, %arg4: memref<128x2xf32, #tpu.memory_space<vmem>>, %arg5: memref<1x2xf32, #tpu.memory_space<vmem>>, %arg6: memref<128x2xf32, #tpu.memory_space<vmem>>) attributes {dimension_semantics = [#tpu.dimension_semantics<parallel>], iteration_bounds = array<i64: 2>, scalar_prefetch = 0 : i64, scratch_operands = 0 : i64, tpu.core_type = #tpu.core_type<tc>, window_params = [{transform_indices = @transform_0, window_bounds = array<i64: 128, 4>}, {pipeline_mode = #tpu.pipeline_mode<synchronous>, transform_indices = @transform_1, window_bounds = array<i64: 4, 128>}, {pipeline_mode = #tpu.pipeline_mode<synchronous>, transform_indices = @transform_2, window_bounds = array<i64: 1, 128>}, {pipeline_mode = #tpu.pipeline_mode<synchronous>, transform_indices = @transform_3, window_bounds = array<i64: 128, 2>}, {pipeline_mode = #tpu.pipeline_mode<synchronous>, transform_indices = @transform_4, window_bounds = array<i64: 1, 2>}, {transform_indices = @transform_5, window_bounds = array<i64: 128, 2>}]} {
    %c0 = arith.constant 0 : index
    %c0_0 = arith.constant 0 : index
    %0 = vector.load %arg1[%c0, %c0_0] : memref<128x4xf32, #tpu.memory_space<vmem>>, vector<128x4xf32>
    %c0_1 = arith.constant 0 : index
    %c0_2 = arith.constant 0 : index
    %1 = vector.load %arg2[%c0_1, %c0_2] : memref<4x128xf32, #tpu.memory_space<vmem>>, vector<4x128xf32>
    %c0_3 = arith.constant 0 : index
    %c0_4 = arith.constant 0 : index
    %2 = vector.load %arg3[%c0_3, %c0_4] : memref<1x128xf32, #tpu.memory_space<vmem>>, vector<1x128xf32>
    %c0_5 = arith.constant 0 : index
    %c0_6 = arith.constant 0 : index
    %3 = vector.load %arg4[%c0_5, %c0_6] : memref<128x2xf32, #tpu.memory_space<vmem>>, vector<128x2xf32>
    %c0_7 = arith.constant 0 : index
    %c0_8 = arith.constant 0 : index
    %4 = vector.load %arg5[%c0_7, %c0_8] : memref<1x2xf32, #tpu.memory_space<vmem>>, vector<1x2xf32>
    %cst = arith.constant dense<0.000000e+00> : vector<128x128xf32>
    %5 = tpu.matmul %0, %1, %cst {dimension_numbers = #tpu.dot_dimension_numbers<[1], [0], [0], [1], [0, 0, 1, 1], [], []>} : vector<128x4xf32>, vector<4x128xf32>, vector<128x128xf32> -> vector<128x128xf32>
    %6 = vector.broadcast %2 : vector<1x128xf32> to vector<128x128xf32>
    %7 = arith.addf %5, %6 : vector<128x128xf32>
    %cst_9 = arith.constant 0.000000e+00 : f32
    %8 = vector.broadcast %cst_9 : f32 to vector<128x128xf32>
    %9 = arith.maximumf %7, %8 : vector<128x128xf32>
    %cst_10 = arith.constant dense<0.000000e+00> : vector<128x2xf32>
    %10 = tpu.matmul %9, %3, %cst_10 {dimension_numbers = #tpu.dot_dimension_numbers<[1], [0], [0], [1], [0, 0, 1, 1], [], []>} : vector<128x128xf32>, vector<128x2xf32>, vector<128x2xf32> -> vector<128x2xf32>
    %11 = vector.broadcast %4 : vector<1x2xf32> to vector<128x2xf32>
    %12 = arith.addf %10, %11 : vector<128x2xf32>
    %cst_11 = arith.constant dense<0xFF800000> : vector<128xf32>
    %13 = vector.multi_reduction <maximumf>, %12, %cst_11 [1] : vector<128x2xf32> to vector<128xf32>
    %14 = vector.shape_cast %13 : vector<128xf32> to vector<128x1xf32>
    %15 = vector.broadcast %14 : vector<128x1xf32> to vector<128x2xf32>
    %16 = arith.subf %12, %15 : vector<128x2xf32>
    %17 = math.exp %16 : vector<128x2xf32>
    %cst_12 = arith.constant dense<0.000000e+00> : vector<128xf32>
    %18 = vector.multi_reduction <add>, %17, %cst_12 [1] : vector<128x2xf32> to vector<128xf32>
    %19 = vector.shape_cast %18 : vector<128xf32> to vector<128x1xf32>
    %20 = tpu.reciprocal %19 {approx = true} : vector<128x1xf32> -> vector<128x1xf32>
    %21 = vector.broadcast %20 : vector<128x1xf32> to vector<128x2xf32>
    %22 = arith.mulf %17, %21 : vector<128x2xf32>
    %c0_13 = arith.constant 0 : index
    %c0_14 = arith.constant 0 : index
    %23 = vector.load %arg6[%c0_13, %c0_14] : memref<128x2xf32, #tpu.memory_space<vmem>>, vector<128x2xf32>
    tpu.vector_store %arg6[%c0_13, %c0_14], %22 {strides = array<i32>} : memref<128x2xf32, #tpu.memory_space<vmem>>, vector<128x2xf32>,
    return
  }
  func.func @transform_0(%arg0: i32) -> (i32, i32) {
    %c0_i32 = arith.constant 0 : i32
    %c0_i32_0 = arith.constant 0 : i32
    return %arg0, %c0_i32 : i32, i32
  }
  func.func @transform_1(%arg0: i32) -> (i32, i32) {
    %c0_i32 = arith.constant 0 : i32
    %c0_i32_0 = arith.constant 0 : i32
    %c0_i32_1 = arith.constant 0 : i32
    return %c0_i32, %c0_i32_0 : i32, i32
  }
  func.func @transform_2(%arg0: i32) -> (i32, i32) {
    %c0_i32 = arith.constant 0 : i32
    %c0_i32_0 = arith.constant 0 : i32
    %c0_i32_1 = arith.constant 0 : i32
    return %c0_i32, %c0_i32_0 : i32, i32
  }
  func.func @transform_3(%arg0: i32) -> (i32, i32) {
    %c0_i32 = arith.constant 0 : i32
    %c0_i32_0 = arith.constant 0 : i32
    %c0_i32_1 = arith.constant 0 : i32
    return %c0_i32, %c0_i32_0 : i32, i32
  }
  func.func @transform_4(%arg0: i32) -> (i32, i32) {
    %c0_i32 = arith.constant 0 : i32
    %c0_i32_0 = arith.constant 0 : i32
    %c0_i32_1 = arith.constant 0 : i32
    return %c0_i32, %c0_i32_0 : i32, i32
  }
  func.func @transform_5(%arg0: i32) -> (i32, i32) {
    %c0_i32 = arith.constant 0 : i32
    %c0_i32_0 = arith.constant 0 : i32
    return %arg0, %c0_i32 : i32, i32
  }
}

</mosaic_0001>

<llo_original>
// kernel: tpu_custom_call.1
$region0: #{tpu_custom_call.1}
  #allocation0 [shape = 'u32[]', space=smem, size = 0x4, offset = 0x4, fixed_abs, tag = 'smem constant byte address 0x4 - core index']
  #allocation1 [shape = 'u32[144,128]{1,0:T(1,128)}', space=vmem, size = 0x12000, scoped, tag = 'internal scratch']
  %s0 = inlined_call_operand.vmem [shape: f32[256,4], index: 0, kind: input, shape index: {}]
  %s1 = inlined_call_operand.vmem [shape: f32[4,128], index: 1, kind: input, shape index: {}]
  %s2 = inlined_call_operand.vmem [shape: f32[1,128], index: 2, kind: input, shape index: {}]
  %s3 = inlined_call_operand.vmem [shape: f32[128,2], index: 3, kind: input, shape index: {}]
  %s4 = inlined_call_operand.vmem [shape: f32[1,2], index: 4, kind: input, shape index: {}]
  %s5 = inlined_call_operand.vmem [shape: f32[256,2], index: 5, kind: output, shape index: {}]
  %s6 = sld [smem:[#allocation0]]
  $region53: #{tpu_custom_call.1} parent=0
    _
  %s8 = ssub.s32 1, %s6
  %s9 = scalar_select 0, %s8, %s6
  loop: start=0, step=1, limit=4
  $region2: #{tpu_custom_call.1} parent=0 // loop_pre_header
    _
  $region3: #{tpu_custom_call.1} parent=0 // loop_header
    %s11 = sphi 0, %s15
    %p12 = scmp.ge.s32.totalorder %s11, 4
    %s21 = sphi 0, %s23
    %s24 = sphi 0, %s21
    %s25 = sphi 0, %s24
    %s41 = sphi 0, %s25
    %s45 = sphi 0, %s45
    %s47 = sphi 0, %s45
    %s48 = sphi 0, %s47
    %s62 = sphi 0, %s48
    %s66 = sphi 0, %s66
    %s68 = sphi 0, %s66
    %s69 = sphi 0, %s68
    %s83 = sphi 0, %s69
    %s87 = sphi 0, %s87
    %s89 = sphi 0, %s87
    %s90 = sphi 0, %s89
    %s104 = sphi 0, %s90
    %s108 = sphi 0, %s108
    %s110 = sphi 0, %s108
    %s111 = sphi 0, %s110
    %s125 = sphi 0, %s111
    %s131 = sphi 0, %s133
    %s134 = sphi 0, %s131
    %s135 = sphi 0, %s134
    %s151 = sphi 0, %s135
  $region4: #{tpu_custom_call.1} parent=0 // loop_header_branch
    %14 = sbr.rel (%p12) target = $region8
  $region5: #{tpu_custom_call.1} parent=0 // loop_body
    %s16 = ssub.s32 %s11, 1
    %s17 = ssub.s32 %s11, 2
    %s18 = sadd.s32 %s11, 1
    %s19 = ssub.s32 %s11, %s18
    %p20 = scmp.eq.s32.totalorder %s19, 0
    %s22 = sadd.s32 %s21, 1
    %s23 = scalar_select %p20, %s21, %s22
    %p26 = pneg %p20
    %p27 = scmp.eq.s32.totalorder %s11, 1
    %p28 = por %p26, %p27
    %p29 = scmp.ne.s32.totalorder %s21, %s24
    %p30 = scmp.eq.s32.totalorder %s11, 0
    %p31 = por %p29, %p30
    %p32 = scmp.ne.s32.totalorder %s21, %s24
    %p33 = scmp.eq.s32.totalorder %s16, 1
    %p34 = por %p32, %p33
    %p35 = scmp.ne.s32.totalorder %s24, %s25
    %p36 = scmp.eq.s32.totalorder %s16, 0
    %p37 = por %p35, %p36
    %p38 = scmp.ne.s32.totalorder %s24, %s25
    %p39 = scmp.eq.s32.totalorder %s17, 1
    %p40 = por %p38, %p39
    %p42 = scmp.ne.s32.totalorder %s25, %s41
    %p43 = scmp.eq.s32.totalorder %s17, 0
    %p44 = por %p42, %p43
    %s46 = sadd.s32 %s45, 1
    %p49 = scmp.eq.s32.totalorder %s11, 1
    %p50 = scmp.ne.s32.totalorder %s45, %s47
    %p51 = scmp.eq.s32.totalorder %s11, 0
    %p52 = por %p50, %p51
    %p53 = scmp.ne.s32.totalorder %s45, %s47
    %p54 = scmp.eq.s32.totalorder %s16, 1
    %p55 = por %p53, %p54
    %p56 = scmp.ne.s32.totalorder %s47, %s48
    %p57 = scmp.eq.s32.totalorder %s16, 0
    %p58 = por %p56, %p57
    %p59 = scmp.ne.s32.totalorder %s47, %s48
    %p60 = scmp.eq.s32.totalorder %s17, 1
    %p61 = por %p59, %p60
    %p63 = scmp.ne.s32.totalorder %s48, %s62
    %p64 = scmp.eq.s32.totalorder %s17, 0
    %p65 = por %p63, %p64
    %s67 = sadd.s32 %s66, 1
    %p70 = scmp.eq.s32.totalorder %s11, 1
    %p71 = scmp.ne.s32.totalorder %s66, %s68
    %p72 = scmp.eq.s32.totalorder %s11, 0
    %p73 = por %p71, %p72
    %p74 = scmp.ne.s32.totalorder %s66, %s68
    %p75 = scmp.eq.s32.totalorder %s16, 1
    %p76 = por %p74, %p75
    %p77 = scmp.ne.s32.totalorder %s68, %s69
    %p78 = scmp.eq.s32.totalorder %s16, 0
    %p79 = por %p77, %p78
    %p80 = scmp.ne.s32.totalorder %s68, %s69
    %p81 = scmp.eq.s32.totalorder %s17, 1
    %p82 = por %p80, %p81
    %p84 = scmp.ne.s32.totalorder %s69, %s83
    %p85 = scmp.eq.s32.totalorder %s17, 0
    %p86 = por %p84, %p85
    %s88 = sadd.s32 %s87, 1
    %p91 = scmp.eq.s32.totalorder %s11, 1
    %p92 = scmp.ne.s32.totalorder %s87, %s89
    %p93 = scmp.eq.s32.totalorder %s11, 0
    %p94 = por %p92, %p93
    %p95 = scmp.ne.s32.totalorder %s87, %s89
    %p96 = scmp.eq.s32.totalorder %s16, 1
    %p97 = por %p95, %p96
    %p98 = scmp.ne.s32.totalorder %s89, %s90
    %p99 = scmp.eq.s32.totalorder %s16, 0
    %p100 = por %p98, %p99
    %p101 = scmp.ne.s32.totalorder %s89, %s90
    %p102 = scmp.eq.s32.totalorder %s17, 1
    %p103 = por %p101, %p102
    %p105 = scmp.ne.s32.totalorder %s90, %s104
    %p106 = scmp.eq.s32.totalorder %s17, 0
    %p107 = por %p105, %p106
    %s109 = sadd.s32 %s108, 1
    %p112 = scmp.eq.s32.totalorder %s11, 1
    %p113 = scmp.ne.s32.totalorder %s108, %s110
    %p114 = scmp.eq.s32.totalorder %s11, 0
    %p115 = por %p113, %p114
    %p116 = scmp.ne.s32.totalorder %s108, %s110
    %p117 = scmp.eq.s32.totalorder %s16, 1
    %p118 = por %p116, %p117
    %p119 = scmp.ne.s32.totalorder %s110, %s111
    %p120 = scmp.eq.s32.totalorder %s16, 0
    %p121 = por %p119, %p120
    %p122 = scmp.ne.s32.totalorder %s110, %s111
    %p123 = scmp.eq.s32.totalorder %s17, 1
    %p124 = por %p122, %p123
    %p126 = scmp.ne.s32.totalorder %s111, %s125
    %p127 = scmp.eq.s32.totalorder %s17, 0
    %p128 = por %p126, %p127
    %s129 = ssub.s32 %s11, %s18
    %p130 = scmp.eq.s32.totalorder %s129, 0
    %s132 = sadd.s32 %s131, 1
    %s133 = scalar_select %p130, %s131, %s132
    %p136 = pneg %p130
    %p137 = scmp.eq.s32.totalorder %s11, 1
    %p138 = por %p136, %p137
    %p139 = scmp.ne.s32.totalorder %s131, %s134
    %p140 = scmp.eq.s32.totalorder %s11, 0
    %p141 = por %p139, %p140
    %p142 = scmp.ne.s32.totalorder %s131, %s134
    %p143 = scmp.eq.s32.totalorder %s16, 1
    %p144 = por %p142, %p143
    %p145 = scmp.ne.s32.totalorder %s134, %s135
    %p146 = scmp.eq.s32.totalorder %s16, 0
    %p147 = por %p145, %p146
    %p148 = scmp.ne.s32.totalorder %s134, %s135
    %p149 = scmp.eq.s32.totalorder %s17, 1
    %p150 = por %p148, %p149
    %p152 = scmp.ne.s32.totalorder %s135, %s151
    %p153 = scmp.eq.s32.totalorder %s17, 0
    %p154 = por %p152, %p153
    %p155 = scmp.le.s32.totalorder 1, %s11
    %p156 = scmp.lt.s32.totalorder %s11, 3
    %p157 = pnand %p155, %p156
    %p158 = pneg %p157
    // Predicated region
    $region9: #{tpu_custom_call.1} parent=5 // pred_check
      _
    $region10: #{tpu_custom_call.1} parent=5 // pred_check_branch
      %160 = sbr.rel (%p157) target = $region12
    $region11: #{tpu_custom_call.1} parent=5 // pred_region
      %s161 = ssub.s32 %s11, 1
      // Predicated region
      $region13: #{tpu_custom_call.1} parent=11 // pred_check
        %p162 = pneg %p58
      $region14: #{tpu_custom_call.1} parent=11 // pred_check_branch
        %164 = sbr.rel (%p162) target = $region16
      $region15: #{tpu_custom_call.1} parent=11 // pred_region
        _
      $region16: #{tpu_custom_call.1} parent=11 // pred_fallthru
        _
      // Predicated region
      $region17: #{tpu_custom_call.1} parent=11 // pred_check
        %p165 = pneg %p79
      $region18: #{tpu_custom_call.1} parent=11 // pred_check_branch
        %167 = sbr.rel (%p165) target = $region20
      $region19: #{tpu_custom_call.1} parent=11 // pred_region
        _
      $region20: #{tpu_custom_call.1} parent=11 // pred_fallthru
        _
      // Predicated region
      $region21: #{tpu_custom_call.1} parent=11 // pred_check
        %p168 = pneg %p100
      $region22: #{tpu_custom_call.1} parent=11 // pred_check_branch
        %170 = sbr.rel (%p168) target = $region24
      $region23: #{tpu_custom_call.1} parent=11 // pred_region
        _
      $region24: #{tpu_custom_call.1} parent=11 // pred_fallthru
        _
      // Predicated region
      $region25: #{tpu_custom_call.1} parent=11 // pred_check
        %p171 = pneg %p121
      $region26: #{tpu_custom_call.1} parent=11 // pred_check_branch
        %173 = sbr.rel (%p171) target = $region28
      $region27: #{tpu_custom_call.1} parent=11 // pred_region
        _
      $region28: #{tpu_custom_call.1} parent=11 // pred_fallthru
        _
    $region12: #{tpu_custom_call.1} parent=5 // pred_fallthru
      _
    %p174 = scmp.lt.s32.totalorder %s11, 2
    // Predicated region
    $region29: #{tpu_custom_call.1} parent=5 // pred_check
      %p175 = pneg %p174
    $region30: #{tpu_custom_call.1} parent=5 // pred_check_branch
      %177 = sbr.rel (%p175) target = $region32
    $region31: #{tpu_custom_call.1} parent=5 // pred_region
      // Predicated region
      $region33: #{tpu_custom_call.1} parent=31 // pred_check
        %p178 = pneg %p31
      $region34: #{tpu_custom_call.1} parent=31 // pred_check_branch
        %180 = sbr.rel (%p178) target = $region36
      $region35: #{tpu_custom_call.1} parent=31 // pred_region
        %s181 = smul.u32 16, %s11
        %p182 = scmp.lt.s32.totalorder %s181, 31
        %s183 = scalar_select %p182, %s181, 31
        %s184 = smul.addr %s183, 8
        %s185 = scalar_lea.vmem %s0, %s184
        %s186 = smul.u32 16, %s11
      $region36: #{tpu_custom_call.1} parent=31 // pred_fallthru
        _
    $region32: #{tpu_custom_call.1} parent=5 // pred_fallthru
      _
    %p187 = scmp.le.s32.totalorder 1, %s11
    %p188 = scmp.lt.s32.totalorder %s11, 3
    %p189 = pnand %p187, %p188
    %p190 = pneg %p189
    // Predicated region
    $region37: #{tpu_custom_call.1} parent=5 // pred_check
      _
    $region38: #{tpu_custom_call.1} parent=5 // pred_check_branch
      %192 = sbr.rel (%p189) target = $region40
    $region39: #{tpu_custom_call.1} parent=5 // pred_region
      %s193 = ssub.s32 %s11, 1
      %s194 = smul.u32 16, %s16
      %p195 = scmp.lt.s32.totalorder %s194, 31
      %s196 = scalar_select %p195, %s194, 31
      %s197 = smul.addr %s196, 8
      %s198 = scalar_lea.vmem %s0, %s197
      %p199 = pneg %p37
      %p200 = pneg %p34
      %p201 = pneg %p58
      %p202 = pneg %p55
      %p203 = pneg %p79
      %p204 = pneg %p76
      %p205 = pneg %p100
      %p206 = pneg %p97
      %p207 = pneg %p121
      %p208 = pneg %p118
      %p209 = pneg %p147
      %p210 = pneg %p144
      %s211 = smul.u32 16, %s16
      %p212 = scmp.lt.s32.totalorder %s211, 31
      %s213 = scalar_select %p212, %s211, 31
      %s214 = smul.addr %s213, 8
      %s215 = scalar_lea.vmem %s5, %s214
      %s216 = smul.u32 16, %s16
      %p217 = scmp.lt.s32.totalorder %s216, 31
      %s218 = scalar_select %p217, %s216, 31
      %s219 = smul.addr %s218, 8
      %s220 = scalar_lea.vmem %s0, %s219
      %s221 = smul.u32 16, %s16
      %s222 = smul.u32 16, %s16
      %p223 = scmp.lt.s32.totalorder %s222, 31
      %s224 = scalar_select %p223, %s222, 31
      %s225 = smul.addr %s224, 8
      %s226 = scalar_lea.vmem %s5, %s225
      %s227 = smul.u32 16, %s16
      %v228 = vld [vmem:[%s220] sm:$0xff]
      %v229 = vld [vmem:[%s220 + $0x8] sm:$0xff]
      %v230 = vld [vmem:[%s220 + $0x10] sm:$0xff]
      %v231 = vld [vmem:[%s220 + $0x18] sm:$0xff]
      %v232 = vld [vmem:[%s220 + $0x20] sm:$0xff]
      %v233 = vld [vmem:[%s220 + $0x28] sm:$0xff]
      %v234 = vld [vmem:[%s220 + $0x30] sm:$0xff]
      %v235 = vld [vmem:[%s220 + $0x38] sm:$0xff]
      %v236 = vld [vmem:[%s220 + $0x40] sm:$0xff]
      %v237 = vld [vmem:[%s220 + $0x48] sm:$0xff]
      %v238 = vld [vmem:[%s220 + $0x50] sm:$0xff]
      %v239 = vld [vmem:[%s220 + $0x58] sm:$0xff]
      %v240 = vld [vmem:[%s220 + $0x60] sm:$0xff]
      %v241 = vld [vmem:[%s220 + $0x68] sm:$0xff]
      %v242 = vld [vmem:[%s220 + $0x70] sm:$0xff]
      %v243 = vld [vmem:[%s220 + $0x78] sm:$0xff]
      %v244 = vld [vmem:[%s1] sm:$0xf]
      %v245 = vld [vmem:[%s2] sm:$0x1]
      %v246 = vld [vmem:[%s3] sm:$0xff]
      %v247 = vld [vmem:[%s3 + $0x8] sm:$0xff]
      %v248 = vld [vmem:[%s3 + $0x10] sm:$0xff]
      %v249 = vld [vmem:[%s3 + $0x18] sm:$0xff]
      %v250 = vld [vmem:[%s3 + $0x20] sm:$0xff]
      %v251 = vld [vmem:[%s3 + $0x28] sm:$0xff]
      %v252 = vld [vmem:[%s3 + $0x30] sm:$0xff]
      %v253 = vld [vmem:[%s3 + $0x38] sm:$0xff]
      %v254 = vld [vmem:[%s3 + $0x40] sm:$0xff]
      %v255 = vld [vmem:[%s3 + $0x48] sm:$0xff]
      %v256 = vld [vmem:[%s3 + $0x50] sm:$0xff]
      %v257 = vld [vmem:[%s3 + $0x58] sm:$0xff]
      %v258 = vld [vmem:[%s3 + $0x60] sm:$0xff]
      %v259 = vld [vmem:[%s3 + $0x68] sm:$0xff]
      %v260 = vld [vmem:[%s3 + $0x70] sm:$0xff]
      %v261 = vld [vmem:[%s3 + $0x78] sm:$0xff]
      %v262 = vld [vmem:[%s4] sm:$0x1]
      %v264 = vlaneseq
      %v265 = vshrl.u32 %v264, 7
      %v266 = vsub.s32 0, %v265
      %v267 = vrot.slane %v245, %v266
      %vm269 = vcmask 31744
      %v271 = vsel %vm269, %v228, 0
      %v274 = vsel %vm269, %v229, 0
      %v277 = vsel %vm269, %v230, 0
      %v280 = vsel %vm269, %v231, 0
      %v283 = vsel %vm269, %v232, 0
      %v286 = vsel %vm269, %v233, 0
      %v289 = vsel %vm269, %v234, 0
      %v292 = vsel %vm269, %v235, 0
      %v295 = vsel %vm269, %v236, 0
      %v298 = vsel %vm269, %v237, 0
      %v301 = vsel %vm269, %v238, 0
      %v304 = vsel %vm269, %v239, 0
      %v307 = vsel %vm269, %v240, 0
      %v310 = vsel %vm269, %v241, 0
      %v313 = vsel %vm269, %v242, 0
      %v316 = vsel %vm269, %v243, 0
      %vm318 = vcmask 1043456
      %v320 = vsel %vm318, %v244, 0
      %322 = vmatprep.subr.mxu0 0.0
      %323 = vmatpush1.msra.mxu0 0.0
      %324 = vmatprep.subr.mxu0 0.0
      %325 = vmatpush1.msra.mxu0 0.0
      %326 = vmatprep.subr.mxu0 0.0
      %327 = vmatpush1.msra.mxu0 0.0
      %328 = vmatprep.subr.mxu0 0.0
      %329 = vmatpush1.msra.mxu0 0.0
      %330 = vmatprep.subr.mxu0 0.0
      %331 = vmatpush1.msra.mxu0 0.0
      %332 = vmatprep.subr.mxu0 0.0
      %333 = vmatpush1.msra.mxu0 0.0
      %334 = vmatprep.subr.mxu0 0.0
      %335 = vmatpush1.msra.mxu0 0.0
      %336 = vmatprep.subr.mxu0 0.0
      %337 = vmatpush1.msra.mxu0 0.0
      %338 = vmatprep.subr.mxu0 0.0
      %339 = vmatpush1.msra.mxu0 0.0
      %340 = vmatprep.subr.mxu0 0.0
      %341 = vmatpush1.msra.mxu0 0.0
      %342 = vmatprep.subr.mxu0 0.0
      %343 = vmatpush1.msra.mxu0 0.0
      %344 = vmatprep.subr.mxu0 0.0
      %345 = vmatpush1.msra.mxu0 0.0
      %346 = vmatprep.subr.mxu0 0.0
      %347 = vmatpush1.msra.mxu0 0.0
      %348 = vmatprep.subr.mxu0 0.0
      %349 = vmatpush1.msra.mxu0 0.0
      %350 = vmatprep.subr.mxu0 0.0
      %351 = vmatpush1.msra.mxu0 0.0
      %352 = vmatprep.subr.mxu0 0.0
      %353 = vmatpush1.msra.mxu0 %v320
      %354 = vmatprep.subr.mxu0 0.0
      %355 = vmatpush2.msra.mxu0 0.0
      %356 = vmatprep.subr.mxu0 0.0
      %357 = vmatpush2.msra.mxu0 0.0
      %358 = vmatprep.subr.mxu0 0.0
      %359 = vmatpush2.msra.mxu0 0.0
      %360 = vmatprep.subr.mxu0 0.0
      %361 = vmatpush2.msra.mxu0 0.0
      %362 = vmatprep.subr.mxu0 0.0
      %363 = vmatpush2.msra.mxu0 0.0
      %364 = vmatprep.subr.mxu0 0.0
      %365 = vmatpush2.msra.mxu0 0.0
      %366 = vmatprep.subr.mxu0 0.0
      %367 = vmatpush2.msra.mxu0 0.0
      %368 = vmatprep.subr.mxu0 0.0
      %369 = vmatpush2.msra.mxu0 0.0
      %370 = vmatprep.subr.mxu0 0.0
      %371 = vmatpush2.msra.mxu0 0.0
      %372 = vmatprep.subr.mxu0 0.0
      %373 = vmatpush2.msra.mxu0 0.0
      %374 = vmatprep.subr.mxu0 0.0
      %375 = vmatpush2.msra.mxu0 0.0
      %376 = vmatprep.subr.mxu0 0.0
      %377 = vmatpush2.msra.mxu0 0.0
      %378 = vmatprep.subr.mxu0 0.0
      %379 = vmatpush2.msra.mxu0 0.0
      %380 = vmatprep.subr.mxu0 0.0
      %381 = vmatpush2.msra.mxu0 0.0
      %382 = vmatprep.subr.mxu0 0.0
      %383 = vmatpush2.msra.mxu0 0.0
      %384 = vmatprep.subr.mxu0 0.0
      %385 = vmatpush2.msra.mxu0 0.0
      %386 = vmatprep.mubr.f32.mxu0 0.0
      %387 = vmatmul.mubr.f32.gmra.mxu0 %v271
      %v388 = vpop.f32.mrf.mxu0
      %v389 = vadd.f32 %v267, %v388
      %v390 = vpop.f32.mrf.mxu0
      %391 = vmatprep.mubr.f32.mxu0 0.0
      %392 = vmatmul.mubr.f32.gmra.mxu0 %v274
      %v393 = vpop.f32.mrf.mxu0
      %v394 = vadd.f32 %v267, %v393
      %v395 = vpop.f32.mrf.mxu0
      %396 = vmatprep.mubr.f32.mxu0 0.0
      %397 = vmatmul.mubr.f32.gmra.mxu0 %v277
      %v398 = vpop.f32.mrf.mxu0
      %v399 = vadd.f32 %v267, %v398
      %v400 = vpop.f32.mrf.mxu0
      %401 = vmatprep.mubr.f32.mxu0 0.0
      %402 = vmatmul.mubr.f32.gmra.mxu0 %v280
      %v403 = vpop.f32.mrf.mxu0
      %v404 = vadd.f32 %v267, %v403
      %v405 = vpop.f32.mrf.mxu0
      %406 = vmatprep.mubr.f32.mxu0 0.0
      %407 = vmatmul.mubr.f32.gmra.mxu0 %v283
      %v408 = vpop.f32.mrf.mxu0
      %v409 = vadd.f32 %v267, %v408
      %v410 = vpop.f32.mrf.mxu0
      %411 = vmatprep.mubr.f32.mxu0 0.0
      %412 = vmatmul.mubr.f32.gmra.mxu0 %v286
      %v413 = vpop.f32.mrf.mxu0
      %v414 = vadd.f32 %v267, %v413
      %v415 = vpop.f32.mrf.mxu0
      %416 = vmatprep.mubr.f32.mxu0 0.0
      %417 = vmatmul.mubr.f32.gmra.mxu0 %v289
      %v418 = vpop.f32.mrf.mxu0
      %v419 = vadd.f32 %v267, %v418
      %v420 = vpop.f32.mrf.mxu0
      %421 = vmatprep.mubr.f32.mxu0 0.0
      %422 = vmatmul.mubr.f32.gmra.mxu0 %v292
      %v423 = vpop.f32.mrf.mxu0
      %v424 = vadd.f32 %v267, %v423
      %v425 = vpop.f32.mrf.mxu0
      %426 = vmatprep.mubr.f32.mxu0 0.0
      %427 = vmatmul.mubr.f32.gmra.mxu0 %v295
      %v428 = vpop.f32.mrf.mxu0
      %v429 = vadd.f32 %v267, %v428
      %v430 = vpop.f32.mrf.mxu0
      %431 = vmatprep.mubr.f32.mxu0 0.0
      %432 = vmatmul.mubr.f32.gmra.mxu0 %v298
      %v433 = vpop.f32.mrf.mxu0
      %v434 = vadd.f32 %v267, %v433
      %v435 = vpop.f32.mrf.mxu0
      %436 = vmatprep.mubr.f32.mxu0 0.0
      %437 = vmatmul.mubr.f32.gmra.mxu0 %v301
      %v438 = vpop.f32.mrf.mxu0
      %v439 = vadd.f32 %v267, %v438
      %v440 = vpop.f32.mrf.mxu0
      %441 = vmatprep.mubr.f32.mxu0 0.0
      %442 = vmatmul.mubr.f32.gmra.mxu0 %v304
      %v443 = vpop.f32.mrf.mxu0
      %v444 = vadd.f32 %v267, %v443
      %v445 = vpop.f32.mrf.mxu0
      %446 = vmatprep.mubr.f32.mxu0 0.0
      %447 = vmatmul.mubr.f32.gmra.mxu0 %v307
      %v448 = vpop.f32.mrf.mxu0
      %v449 = vadd.f32 %v267, %v448
      %v450 = vpop.f32.mrf.mxu0
      %451 = vmatprep.mubr.f32.mxu0 0.0
      %452 = vmatmul.mubr.f32.gmra.mxu0 %v310
      %v453 = vpop.f32.mrf.mxu0
      %v454 = vadd.f32 %v267, %v453
      %v455 = vpop.f32.mrf.mxu0
      %456 = vmatprep.mubr.f32.mxu0 0.0
      %457 = vmatmul.mubr.f32.gmra.mxu0 %v313
      %v458 = vpop.f32.mrf.mxu0
      %v459 = vadd.f32 %v267, %v458
      %v460 = vpop.f32.mrf.mxu0
      %461 = vmatprep.mubr.f32.mxu0 0.0
      %462 = vmatmul.mubr.f32.gmra.mxu0 %v316
      %v463 = vpop.f32.mrf.mxu0
      %v464 = vadd.f32 %v267, %v463
      %v465 = vpop.f32.mrf.mxu0
      %466 = vdwg.mxu0
      %v467 = vmax.f32 %v389, 0.0
      %v468 = vmax.f32 %v394, 0.0
      %v469 = vmax.f32 %v399, 0.0
      %v470 = vmax.f32 %v404, 0.0
      %v471 = vmax.f32 %v409, 0.0
      %v472 = vmax.f32 %v414, 0.0
      %v473 = vmax.f32 %v419, 0.0
      %v474 = vmax.f32 %v424, 0.0
      %v475 = vmax.f32 %v429, 0.0
      %v476 = vmax.f32 %v434, 0.0
      %v477 = vmax.f32 %v439, 0.0
      %v478 = vmax.f32 %v444, 0.0
      %v479 = vmax.f32 %v449, 0.0
      %v480 = vmax.f32 %v454, 0.0
      %v481 = vmax.f32 %v459, 0.0
      %v482 = vmax.f32 %v464, 0.0
      %v484 = vlaneseq
      %v485 = vshrl.u32 %v484, 7
      %v486 = vsub.s32 0, %v485
      %v487 = vrot.slane %v262, %v486
      %489 = vmatprep.subr.mxu0 0.0
      %490 = vmatpush1.msra.mxu0 %v261
      %491 = vmatprep.subr.mxu0 0.0
      %492 = vmatpush1.msra.mxu0 %v260
      %493 = vmatprep.subr.mxu0 0.0
      %494 = vmatpush1.msra.mxu0 %v259
      %495 = vmatprep.subr.mxu0 0.0
      %496 = vmatpush1.msra.mxu0 %v258
      %497 = vmatprep.subr.mxu0 0.0
      %498 = vmatpush1.msra.mxu0 %v257
      %499 = vmatprep.subr.mxu0 0.0
      %500 = vmatpush1.msra.mxu0 %v256
      %501 = vmatprep.subr.mxu0 0.0
      %502 = vmatpush1.msra.mxu0 %v255
      %503 = vmatprep.subr.mxu0 0.0
      %504 = vmatpush1.msra.mxu0 %v254
      %505 = vmatprep.subr.mxu0 0.0
      %506 = vmatpush1.msra.mxu0 %v253
      %507 = vmatprep.subr.mxu0 0.0
      %508 = vmatpush1.msra.mxu0 %v252
      %509 = vmatprep.subr.mxu0 0.0
      %510 = vmatpush1.msra.mxu0 %v251
      %511 = vmatprep.subr.mxu0 0.0
      %512 = vmatpush1.msra.mxu0 %v250
      %513 = vmatprep.subr.mxu0 0.0
      %514 = vmatpush1.msra.mxu0 %v249
      %515 = vmatprep.subr.mxu0 0.0
      %516 = vmatpush1.msra.mxu0 %v248
      %517 = vmatprep.subr.mxu0 0.0
      %518 = vmatpush1.msra.mxu0 %v247
      %519 = vmatprep.subr.mxu0 0.0
      %520 = vmatpush1.msra.mxu0 %v246
      %521 = vmatprep.subr.mxu0 0.0
      %522 = vmatpush2.msra.mxu0 0.0
      %523 = vmatprep.subr.mxu0 0.0
      %524 = vmatpush2.msra.mxu0 0.0
      %525 = vmatprep.subr.mxu0 0.0
      %526 = vmatpush2.msra.mxu0 0.0
      %527 = vmatprep.subr.mxu0 0.0
      %528 = vmatpush2.msra.mxu0 0.0
      %529 = vmatprep.subr.mxu0 0.0
      %530 = vmatpush2.msra.mxu0 0.0
      %531 = vmatprep.subr.mxu0 0.0
      %532 = vmatpush2.msra.mxu0 0.0
      %533 = vmatprep.subr.mxu0 0.0
      %534 = vmatpush2.msra.mxu0 0.0
      %535 = vmatprep.subr.mxu0 0.0
      %536 = vmatpush2.msra.mxu0 0.0
      %537 = vmatprep.subr.mxu0 0.0
      %538 = vmatpush2.msra.mxu0 0.0
      %539 = vmatprep.subr.mxu0 0.0
      %540 = vmatpush2.msra.mxu0 0.0
      %541 = vmatprep.subr.mxu0 0.0
      %542 = vmatpush2.msra.mxu0 0.0
      %543 = vmatprep.subr.mxu0 0.0
      %544 = vmatpush2.msra.mxu0 0.0
      %545 = vmatprep.subr.mxu0 0.0
      %546 = vmatpush2.msra.mxu0 0.0
      %547 = vmatprep.subr.mxu0 0.0
      %548 = vmatpush2.msra.mxu0 0.0
      %549 = vmatprep.subr.mxu0 0.0
      %550 = vmatpush2.msra.mxu0 0.0
      %551 = vmatprep.subr.mxu0 0.0
      %552 = vmatpush2.msra.mxu0 0.0
      %553 = vmatprep.mubr.f32.mxu0 0.0
      %554 = vmatmul.mubr.f32.gmra.mxu0 %v467
      %v555 = vpop.f32.mrf.mxu0
      %v556 = vadd.f32 %v487, %v555
      %v557 = vpop.f32.mrf.mxu0
      %558 = vmatprep.mubr.f32.mxu0 0.0
      %559 = vmatmul.mubr.f32.gmra.mxu0 %v468
      %v560 = vpop.f32.mrf.mxu0
      %v561 = vadd.f32 %v487, %v560
      %v562 = vpop.f32.mrf.mxu0
      %563 = vmatprep.mubr.f32.mxu0 0.0
      %564 = vmatmul.mubr.f32.gmra.mxu0 %v469
      %v565 = vpop.f32.mrf.mxu0
      %v566 = vadd.f32 %v487, %v565
      %v567 = vpop.f32.mrf.mxu0
      %568 = vmatprep.mubr.f32.mxu0 0.0
      %569 = vmatmul.mubr.f32.gmra.mxu0 %v470
      %v570 = vpop.f32.mrf.mxu0
      %v571 = vadd.f32 %v487, %v570
      %v572 = vpop.f32.mrf.mxu0
      %573 = vmatprep.mubr.f32.mxu0 0.0
      %574 = vmatmul.mubr.f32.gmra.mxu0 %v471
      %v575 = vpop.f32.mrf.mxu0
      %v576 = vadd.f32 %v487, %v575
      %v577 = vpop.f32.mrf.mxu0
      %578 = vmatprep.mubr.f32.mxu0 0.0
      %579 = vmatmul.mubr.f32.gmra.mxu0 %v472
      %v580 = vpop.f32.mrf.mxu0
      %v581 = vadd.f32 %v487, %v580
      %v582 = vpop.f32.mrf.mxu0
      %583 = vmatprep.mubr.f32.mxu0 0.0
      %584 = vmatmul.mubr.f32.gmra.mxu0 %v473
      %v585 = vpop.f32.mrf.mxu0
      %v586 = vadd.f32 %v487, %v585
      %v587 = vpop.f32.mrf.mxu0
      %588 = vmatprep.mubr.f32.mxu0 0.0
      %589 = vmatmul.mubr.f32.gmra.mxu0 %v474
      %v590 = vpop.f32.mrf.mxu0
      %v591 = vadd.f32 %v487, %v590
      %v592 = vpop.f32.mrf.mxu0
      %593 = vmatprep.mubr.f32.mxu0 0.0
      %594 = vmatmul.mubr.f32.gmra.mxu0 %v475
      %v595 = vpop.f32.mrf.mxu0
      %v596 = vadd.f32 %v487, %v595
      %v597 = vpop.f32.mrf.mxu0
      %598 = vmatprep.mubr.f32.mxu0 0.0
      %599 = vmatmul.mubr.f32.gmra.mxu0 %v476
      %v600 = vpop.f32.mrf.mxu0
      %v601 = vadd.f32 %v487, %v600
      %v602 = vpop.f32.mrf.mxu0
      %603 = vmatprep.mubr.f32.mxu0 0.0
      %604 = vmatmul.mubr.f32.gmra.mxu0 %v477
      %v605 = vpop.f32.mrf.mxu0
      %v606 = vadd.f32 %v487, %v605
      %v607 = vpop.f32.mrf.mxu0
      %608 = vmatprep.mubr.f32.mxu0 0.0
      %609 = vmatmul.mubr.f32.gmra.mxu0 %v478
      %v610 = vpop.f32.mrf.mxu0
      %v611 = vadd.f32 %v487, %v610
      %v612 = vpop.f32.mrf.mxu0
      %613 = vmatprep.mubr.f32.mxu0 0.0
      %614 = vmatmul.mubr.f32.gmra.mxu0 %v479
      %v615 = vpop.f32.mrf.mxu0
      %v616 = vadd.f32 %v487, %v615
      %v617 = vpop.f32.mrf.mxu0
      %618 = vmatprep.mubr.f32.mxu0 0.0
      %619 = vmatmul.mubr.f32.gmra.mxu0 %v480
      %v620 = vpop.f32.mrf.mxu0
      %v621 = vadd.f32 %v487, %v620
      %v622 = vpop.f32.mrf.mxu0
      %623 = vmatprep.mubr.f32.mxu0 0.0
      %624 = vmatmul.mubr.f32.gmra.mxu0 %v481
      %v625 = vpop.f32.mrf.mxu0
      %v626 = vadd.f32 %v487, %v625
      %v627 = vpop.f32.mrf.mxu0
      %628 = vmatprep.mubr.f32.mxu0 0.0
      %629 = vmatmul.mubr.f32.gmra.mxu0 %v482
      %v630 = vpop.f32.mrf.mxu0
      %v631 = vadd.f32 %v487, %v630
      %v632 = vpop.f32.mrf.mxu0
      %633 = vdwg.mxu0
      %vm634 = vcmask 15360
      %v635 = vsel %vm634, %v556, -inf
      %636 = vmax.xlane.f32.xlu0 %v635
      %v637 = vpop.xlane.xlu0 %636
      %v638 = vsel %vm634, %v561, -inf
      %639 = vmax.xlane.f32.xlu0 %v638
      %v640 = vpop.xlane.xlu0 %639
      %v641 = vsel %vm634, %v566, -inf
      %642 = vmax.xlane.f32.xlu0 %v641
      %v643 = vpop.xlane.xlu0 %642
      %v644 = vsel %vm634, %v571, -inf
      %645 = vmax.xlane.f32.xlu0 %v644
      %v646 = vpop.xlane.xlu0 %645
      %v647 = vsel %vm634, %v576, -inf
      %648 = vmax.xlane.f32.xlu0 %v647
      %v649 = vpop.xlane.xlu0 %648
      %v650 = vsel %vm634, %v581, -inf
      %651 = vmax.xlane.f32.xlu0 %v650
      %v652 = vpop.xlane.xlu0 %651
      %v653 = vsel %vm634, %v586, -inf
      %654 = vmax.xlane.f32.xlu0 %v653
      %v655 = vpop.xlane.xlu0 %654
      %v656 = vsel %vm634, %v591, -inf
      %657 = vmax.xlane.f32.xlu0 %v656
      %v658 = vpop.xlane.xlu0 %657
      %v659 = vsel %vm634, %v596, -inf
      %660 = vmax.xlane.f32.xlu0 %v659
      %v661 = vpop.xlane.xlu0 %660
      %v662 = vsel %vm634, %v601, -inf
      %663 = vmax.xlane.f32.xlu0 %v662
      %v664 = vpop.xlane.xlu0 %663
      %v665 = vsel %vm634, %v606, -inf
      %666 = vmax.xlane.f32.xlu0 %v665
      %v667 = vpop.xlane.xlu0 %666
      %v668 = vsel %vm634, %v611, -inf
      %669 = vmax.xlane.f32.xlu0 %v668
      %v670 = vpop.xlane.xlu0 %669
      %v671 = vsel %vm634, %v616, -inf
      %672 = vmax.xlane.f32.xlu0 %v671
      %v673 = vpop.xlane.xlu0 %672
      %v674 = vsel %vm634, %v621, -inf
      %675 = vmax.xlane.f32.xlu0 %v674
      %v676 = vpop.xlane.xlu0 %675
      %v677 = vsel %vm634, %v626, -inf
      %678 = vmax.xlane.f32.xlu0 %v677
      %v679 = vpop.xlane.xlu0 %678
      %v680 = vsel %vm634, %v631, -inf
      %681 = vmax.xlane.f32.xlu0 %v680
      %v682 = vpop.xlane.xlu0 %681
      %v683 = vsub.f32 %v556, %v637
      %v684 = vsub.f32 %v561, %v640
      %v685 = vsub.f32 %v566, %v643
      %v686 = vsub.f32 %v571, %v646
      %v687 = vsub.f32 %v576, %v649
      %v688 = vsub.f32 %v581, %v652
      %v689 = vsub.f32 %v586, %v655
      %v690 = vsub.f32 %v591, %v658
      %v691 = vsub.f32 %v596, %v661
      %v692 = vsub.f32 %v601, %v664
      %v693 = vsub.f32 %v606, %v667
      %v694 = vsub.f32 %v611, %v670
      %v695 = vsub.f32 %v616, %v673
      %v696 = vsub.f32 %v621, %v676
      %v697 = vsub.f32 %v626, %v679
      %v698 = vsub.f32 %v631, %v682
      %v699 = vmul.f32 %v683, 1.442695
      %v700 = vpow.pop %v699
      %v701 = vmul.f32 %v684, 1.442695
      %v702 = vpow.pop %v701
      %v703 = vmul.f32 %v685, 1.442695
      %v704 = vpow.pop %v703
      %v705 = vmul.f32 %v686, 1.442695
      %v706 = vpow.pop %v705
      %v707 = vmul.f32 %v687, 1.442695
      %v708 = vpow.pop %v707
      %v709 = vmul.f32 %v688, 1.442695
      %v710 = vpow.pop %v709
      %v711 = vmul.f32 %v689, 1.442695
      %v712 = vpow.pop %v711
      %v713 = vmul.f32 %v690, 1.442695
      %v714 = vpow.pop %v713
      %v715 = vmul.f32 %v691, 1.442695
      %v716 = vpow.pop %v715
      %v717 = vmul.f32 %v692, 1.442695
      %v718 = vpow.pop %v717
      %v719 = vmul.f32 %v693, 1.442695
      %v720 = vpow.pop %v719
      %v721 = vmul.f32 %v694, 1.442695
      %v722 = vpow.pop %v721
      %v723 = vmul.f32 %v695, 1.442695
      %v724 = vpow.pop %v723
      %v725 = vmul.f32 %v696, 1.442695
      %v726 = vpow.pop %v725
      %v727 = vmul.f32 %v697, 1.442695
      %v728 = vpow.pop %v727
      %v729 = vmul.f32 %v698, 1.442695
      %v730 = vpow.pop %v729
      %v731 = vsel %vm634, %v700, 0.0
      %732 = vadd.xlane.f32.xlu0 %v731
      %v733 = vpop.xlane.xlu0 %732
      %v734 = vsel %vm634, %v702, 0.0
      %735 = vadd.xlane.f32.xlu0 %v734
      %v736 = vpop.xlane.xlu0 %735
      %v737 = vsel %vm634, %v704, 0.0
      %738 = vadd.xlane.f32.xlu0 %v737
      %v739 = vpop.xlane.xlu0 %738
      %v740 = vsel %vm634, %v706, 0.0
      %741 = vadd.xlane.f32.xlu0 %v740
      %v742 = vpop.xlane.xlu0 %741
      %v743 = vsel %vm634, %v708, 0.0
      %744 = vadd.xlane.f32.xlu0 %v743
      %v745 = vpop.xlane.xlu0 %744
      %v746 = vsel %vm634, %v710, 0.0
      %747 = vadd.xlane.f32.xlu0 %v746
      %v748 = vpop.xlane.xlu0 %747
      %v749 = vsel %vm634, %v712, 0.0
      %750 = vadd.xlane.f32.xlu0 %v749
      %v751 = vpop.xlane.xlu0 %750
      %v752 = vsel %vm634, %v714, 0.0
      %753 = vadd.xlane.f32.xlu0 %v752
      %v754 = vpop.xlane.xlu0 %753
      %v755 = vsel %vm634, %v716, 0.0
      %756 = vadd.xlane.f32.xlu0 %v755
      %v757 = vpop.xlane.xlu0 %756
      %v758 = vsel %vm634, %v718, 0.0
      %759 = vadd.xlane.f32.xlu0 %v758
      %v760 = vpop.xlane.xlu0 %759
      %v761 = vsel %vm634, %v720, 0.0
      %762 = vadd.xlane.f32.xlu0 %v761
      %v763 = vpop.xlane.xlu0 %762
      %v764 = vsel %vm634, %v722, 0.0
      %765 = vadd.xlane.f32.xlu0 %v764
      %v766 = vpop.xlane.xlu0 %765
      %v767 = vsel %vm634, %v724, 0.0
      %768 = vadd.xlane.f32.xlu0 %v767
      %v769 = vpop.xlane.xlu0 %768
      %v770 = vsel %vm634, %v726, 0.0
      %771 = vadd.xlane.f32.xlu0 %v770
      %v772 = vpop.xlane.xlu0 %771
      %v773 = vsel %vm634, %v728, 0.0
      %774 = vadd.xlane.f32.xlu0 %v773
      %v775 = vpop.xlane.xlu0 %774
      %v776 = vsel %vm634, %v730, 0.0
      %777 = vadd.xlane.f32.xlu0 %v776
      %v778 = vpop.xlane.xlu0 %777
      %v779 = vrcp.pop %v733
      %v780 = vrcp.pop %v736
      %v781 = vrcp.pop %v739
      %v782 = vrcp.pop %v742
      %v783 = vrcp.pop %v745
      %v784 = vrcp.pop %v748
      %v785 = vrcp.pop %v751
      %v786 = vrcp.pop %v754
      %v787 = vrcp.pop %v757
      %v788 = vrcp.pop %v760
      %v789 = vrcp.pop %v763
      %v790 = vrcp.pop %v766
      %v791 = vrcp.pop %v769
      %v792 = vrcp.pop %v772
      %v793 = vrcp.pop %v775
      %v794 = vrcp.pop %v778
      %v795 = vmul.f32 %v700, %v779
      %v796 = vmul.f32 %v702, %v780
      %v797 = vmul.f32 %v704, %v781
      %v798 = vmul.f32 %v706, %v782
      %v799 = vmul.f32 %v708, %v783
      %v800 = vmul.f32 %v710, %v784
      %v801 = vmul.f32 %v712, %v785
      %v802 = vmul.f32 %v714, %v786
      %v803 = vmul.f32 %v716, %v787
      %v804 = vmul.f32 %v718, %v788
      %v805 = vmul.f32 %v720, %v789
      %v806 = vmul.f32 %v722, %v790
      %v807 = vmul.f32 %v724, %v791
      %v808 = vmul.f32 %v726, %v792
      %v809 = vmul.f32 %v728, %v793
      %v810 = vmul.f32 %v730, %v794
      %811 = vst.msk [vmem:[%s226] sm:$0xff] %vm634, %v795
      %812 = vst.msk [vmem:[%s226 + $0x8] sm:$0xff] %vm634, %v796
      %813 = vst.msk [vmem:[%s226 + $0x10] sm:$0xff] %vm634, %v797
      %814 = vst.msk [vmem:[%s226 + $0x18] sm:$0xff] %vm634, %v798
      %815 = vst.msk [vmem:[%s226 + $0x20] sm:$0xff] %vm634, %v799
      %816 = vst.msk [vmem:[%s226 + $0x28] sm:$0xff] %vm634, %v800
      %817 = vst.msk [vmem:[%s226 + $0x30] sm:$0xff] %vm634, %v801
      %818 = vst.msk [vmem:[%s226 + $0x38] sm:$0xff] %vm634, %v802
      %819 = vst.msk [vmem:[%s226 + $0x40] sm:$0xff] %vm634, %v803
      %820 = vst.msk [vmem:[%s226 + $0x48] sm:$0xff] %vm634, %v804
      %821 = vst.msk [vmem:[%s226 + $0x50] sm:$0xff] %vm634, %v805
      %822 = vst.msk [vmem:[%s226 + $0x58] sm:$0xff] %vm634, %v806
      %823 = vst.msk [vmem:[%s226 + $0x60] sm:$0xff] %vm634, %v807
      %824 = vst.msk [vmem:[%s226 + $0x68] sm:$0xff] %vm634, %v808
      %825 = vst.msk [vmem:[%s226 + $0x70] sm:$0xff] %vm634, %v809
      %826 = vst.msk [vmem:[%s226 + $0x78] sm:$0xff] %vm634, %v810
      %s827 = smul.u32 16, %s16
      %p828 = scmp.lt.s32.totalorder %s827, 31
      %s829 = scalar_select %p828, %s827, 31
      %s830 = smul.addr %s829, 8
      %s831 = scalar_lea.vmem %s5, %s830
      // Predicated region
      $region41: #{tpu_custom_call.1} parent=39 // pred_check
        %p832 = pneg %p144
      $region42: #{tpu_custom_call.1} parent=39 // pred_check_branch
        %834 = sbr.rel (%p832) target = $region44
      $region43: #{tpu_custom_call.1} parent=39 // pred_region
        %s835 = smul.u32 16, %s16
      $region44: #{tpu_custom_call.1} parent=39 // pred_fallthru
        _
    $region40: #{tpu_custom_call.1} parent=5 // pred_fallthru
      _
    %p836 = scmp.le.s32.totalorder 2, %s11
    // Predicated region
    $region45: #{tpu_custom_call.1} parent=5 // pred_check
      %p837 = pneg %p836
    $region46: #{tpu_custom_call.1} parent=5 // pred_check_branch
      %839 = sbr.rel (%p837) target = $region48
    $region47: #{tpu_custom_call.1} parent=5 // pred_region
      %s840 = ssub.s32 %s11, 2
      // Predicated region
      $region49: #{tpu_custom_call.1} parent=47 // pred_check
        %p841 = pneg %p150
      $region50: #{tpu_custom_call.1} parent=47 // pred_check_branch
        %843 = sbr.rel (%p841) target = $region52
      $region51: #{tpu_custom_call.1} parent=47 // pred_region
        %s844 = smul.u32 16, %s17
        %p845 = scmp.lt.s32.totalorder %s844, 31
        %s846 = scalar_select %p845, %s844, 31
        %s847 = smul.addr %s846, 8
        %s848 = scalar_lea.vmem %s5, %s847
      $region52: #{tpu_custom_call.1} parent=47 // pred_fallthru
        _
    $region48: #{tpu_custom_call.1} parent=5 // pred_fallthru
      _
  $region6: #{tpu_custom_call.1} parent=0 // loop_footer
    %s15 = sadd.s32 1, %s11
  $region7: #{tpu_custom_call.1} parent=0 // loop_footer_branch
    %10 = sbr.rel target = $region3
  $region8: #{tpu_custom_call.1} parent=0 // loop_exit
    _

</llo_original>
